<compile_context>
chip_gen: v6e
topology: v6e:2x2x1
jax: 0.10.0
libtpu: 0.0.40
codegen_flags: <defaults>
</compile_context>

<pallas_src>
import functools

import jax
import jax.numpy as jnp
from jax.experimental import pallas as pl
from jax.experimental.pallas import tpu as pltpu


DEFAULT_MAX_L_TILE = 32768  # lanes per grid step (multiple of 128)


# ----------------------------- Pallas kernel --------------------------------
def _put_tail_kernel(x_ref, w_ref, b_ref, o_ref):
    """One (batch, L-tile) grid step; all r shuffle phases handled in-block.

    x_ref: (r, K, Lt) VMEM -- all channel groups of the original NCL input
    w_ref: (N, K)     VMEM -- conv1x1 weight, resident (constant index_map)
    b_ref: (N, 1)     VMEM -- conv1x1 bias, resident
    o_ref: (r, N, Lt) VMEM -- lane-dense output rows for this (b, L-tile)
    """
    r, k_in, _ = x_ref.shape
    w = w_ref[...].astype(jnp.float32)            # (N, K)
    bias = b_ref[...].astype(jnp.float32)         # (N, 1), lane-broadcast add
    # Hoist weight column slices out of the phase loop (JAX does not CSE
    # broadcast_in_dims).
    w_cols = [w[:, k:k + 1] for k in range(k_in)]  # each (N, 1)

    for j in range(r):                             # static unroll over phases
        xj = x_ref[j].astype(jnp.float32)          # (K, Lt), positions on lanes
        # Unrolled VPU multiply-accumulate over the tiny contraction dim K.
        acc = w_cols[0] * xj[0:1, :]               # (N,1)*(1,Lt) -> (N, Lt)
        for k in range(1, k_in):
            acc = acc + w_cols[k] * xj[k:k + 1, :]
        o_ref[j] = (acc + bias).astype(o_ref.dtype)


# ------------------------------ Tiling choice --------------------------------
def _choose_l_tile(batch, length, max_l_tile):
    """Pick (l_tile, n_l). l_tile is a multiple of 128 or the full length."""
    if length <= max_l_tile:
        # Single full-L block, unless B == 1 and L is large enough that
        # splitting gives >= 2 parallel grid steps (v7x has 2 TensorCores).
        if batch >= 2 or length <= 1024:
            return length, 1
        half = -(-((length + 1) // 2) // 128) * 128
        half = max(128, min(half, max_l_tile))
        if half >= length:
            return length, 1
        return half, -(-length // half)
    l_tile = max_l_tile                            # multiple of 128; tail masked
    return l_tile, -(-length // l_tile)


def _shuffled_conv1x1(x4, w, b, *, max_l_tile=DEFAULT_MAX_L_TILE):
    """x4: (B, r, K, L), w: (N, K), b: (N, 1) ->
       out: (B, r, N, L) with out[b, j, n, l] = sum_k w[n,k]*x4[b,j,k,l] + b[n,0]."""
    B, r, K, L = x4.shape
    N = w.shape[0]

    l_tile, n_l = _choose_l_tile(B, L, max_l_tile)
    grid = (B, n_l)                                # L-tile axis innermost

    return pl.pallas_call(
        _put_tail_kernel,
        out_shape=jax.ShapeDtypeStruct((B, r, N, L), x4.dtype),
        grid_spec=pltpu.PrefetchScalarGridSpec(
            num_scalar_prefetch=0,
            grid=grid,
            in_specs=[
                # All r channel groups of the (free-reshaped) NCL input,
                # positions on lanes -> one contiguous DMA slab per step.
                pl.BlockSpec((None, r, K, l_tile),
                             lambda bi, li: (bi, 0, 0, li)),
                # Tiny resident weight / bias tiles (constant block index).
                pl.BlockSpec((N, K), lambda bi, li: (0, 0)),
                pl.BlockSpec((N, 1), lambda bi, li: (0, 0)),
            ],
            out_specs=pl.BlockSpec((None, r, N, l_tile),
                                   lambda bi, li: (bi, 0, 0, li)),
        ),
        compiler_params=pltpu.CompilerParams(
            dimension_semantics=("parallel", "parallel"),
            vmem_limit_bytes=32 * 1024 * 1024,
        ),
    )(x4, w, b)


# ------------------------------- Glue (JAX) ---------------------------------
@functools.partial(jax.jit, static_argnames=("upscale_factor", "max_l_tile"))
def put_tail_forward(x, weight, bias, upscale_factor,
                     max_l_tile=DEFAULT_MAX_L_TILE):
    """x: (B, C_in, L) NCL, weight: (C_out, C_in // r, 1), bias: (C_out,)."""
    r = upscale_factor
    B, C, L = x.shape
    assert C % r == 0, "in_channels must be divisible by upscale_factor"
    K = C // r
    N = weight.shape[0]
    assert weight.shape == (N, K, 1)

    # Free reshape (no data movement): x4[b, j, k, l] == x[b, j*K + k, l]
    x4 = x.reshape(B, r, K, L)
    w2 = weight[:, :, 0]          # (N, K)
    b2 = bias.reshape(N, 1)       # (N, 1)

    out4 = _shuffled_conv1x1(x4, w2, b2, max_l_tile=max_l_tile)  # (B, r, N, L)

    # y[b, n, l*r + j] == out4[b, j, n, l]: one small output-side transpose,
    # then a free reshape to NCL (B, C_out, L*r).
    # TODO(synk): this transpose is one extra HBM pass over the output; Mosaic
    # has no lane-strided vector store, so the stride-r interleave cannot be
    # written lane-dense from inside the kernel without an expensive relayout.
    return jnp.transpose(out4, (0, 2, 3, 1)).reshape(B, N, L * r)


def pixel_shuffle_1d(x, r):
    """PixelShuffle1D: (B, C, L) -> (B, C//r, L*r)."""
    B, C, L = x.shape
    c_out = C // r
    x = x.reshape(B, r, c_out, L)
    x = jnp.transpose(x, (0, 2, 3, 1))      # (B, C//r, L, r)
    return x.reshape(B, c_out, L * r)


def put_tail_reference(x, weight, bias, upscale_factor):
    """Pure-JAX reference (mirrors the PyTorch forward)."""
    up = pixel_shuffle_1d(x, upscale_factor)                # (B, K, L*r)
    w2 = weight[:, :, 0]                                    # (N, K)
    return jnp.einsum("nk,bkl->bnl", w2, up) + bias[None, :, None]


# --------------------------------- Main --------------------------------------
if __name__ == "__main__":
    in_channels = 16
    out_channels = 3
    upscale_factor = 4

    B, L = 2, 16
    key = jax.random.PRNGKey(0)
    kx, kw, kb = jax.random.split(key, 3)

    x = jax.random.normal(kx, (B, in_channels, L), dtype=jnp.float32)
    weight = jax.random.normal(
        kw, (out_channels, in_channels // upscale_factor, 1), dtype=jnp.float32
    ) * 0.1
    bias = jax.random.normal(kb, (out_channels,), dtype=jnp.float32) * 0.1

    out = jax.block_until_ready(put_tail_forward(x, weight, bias, upscale_factor))
    ref = put_tail_reference(x, weight, bias, upscale_factor)
    assert out.shape == (B, out_channels, L * upscale_factor), out.shape
    assert jnp.allclose(out, ref, atol=1e-5, rtol=1e-5), "mismatch vs reference"

    # Multi-tile + ragged-length path (L not a multiple of the lane tile):
    x2 = jax.random.normal(kx, (1, in_channels, 200), dtype=jnp.float32)
    out2 = jax.block_until_ready(
        put_tail_forward(x2, weight, bias, upscale_factor, max_l_tile=128))
    ref2 = put_tail_reference(x2, weight, bias, upscale_factor)
    assert out2.shape == (1, out_channels, 200 * upscale_factor), out2.shape
    assert jnp.allclose(out2, ref2, atol=1e-5, rtol=1e-5), "mismatch (ragged path)"

    # B == 1 with larger L: exercises the 2-way L split (>=2 parallel steps).
    x3 = jax.random.normal(kx, (1, in_channels, 2048), dtype=jnp.float32)
    out3 = jax.block_until_ready(put_tail_forward(x3, weight, bias, upscale_factor))
    ref3 = put_tail_reference(x3, weight, bias, upscale_factor)
    assert out3.shape == (1, out_channels, 2048 * upscale_factor), out3.shape
    assert jnp.allclose(out3, ref3, atol=1e-5, rtol=1e-5), "mismatch (split-L path)"

    print("KERNEL_OK")
</pallas_src>

<mosaic_0001>
module attributes {stable_mosaic.version = 11 : i64} {
  func.func @_put_tail_kernel(%arg0: i32, %arg1: i32, %arg2: memref<1x4x4x16xf32, #tpu.memory_space<vmem>>, %arg3: memref<3x4xf32, #tpu.memory_space<vmem>>, %arg4: memref<3x1xf32, #tpu.memory_space<vmem>>, %arg5: memref<1x4x3x16xf32, #tpu.memory_space<vmem>>) attributes {dimension_semantics = [#tpu.dimension_semantics<parallel>, #tpu.dimension_semantics<parallel>], iteration_bounds = array<i64: 2, 1>, scalar_prefetch = 0 : i64, scratch_operands = 0 : i64, tpu.core_type = #tpu.core_type<tc>, window_params = [{transform_indices = @transform_0, window_bounds = array<i64: 1, 4, 4, 16>}, {pipeline_mode = #tpu.pipeline_mode<synchronous>, transform_indices = @transform_1, window_bounds = array<i64: 3, 4>}, {pipeline_mode = #tpu.pipeline_mode<synchronous>, transform_indices = @transform_2, window_bounds = array<i64: 3, 1>}, {transform_indices = @transform_3, window_bounds = array<i64: 1, 4, 3, 16>}]} {
    %c0 = arith.constant 0 : index
    %c0_0 = arith.constant 0 : index
    %0 = vector.load %arg3[%c0, %c0_0] : memref<3x4xf32, #tpu.memory_space<vmem>>, vector<3x4xf32>
    %c0_1 = arith.constant 0 : index
    %c0_2 = arith.constant 0 : index
    %1 = vector.load %arg4[%c0_1, %c0_2] : memref<3x1xf32, #tpu.memory_space<vmem>>, vector<3x1xf32>
    %2 = vector.extract_strided_slice %0 {offsets = [0, 0], sizes = [3, 1], strides = [1, 1]} : vector<3x4xf32> to vector<3x1xf32>
    %3 = vector.extract_strided_slice %0 {offsets = [0, 1], sizes = [3, 1], strides = [1, 1]} : vector<3x4xf32> to vector<3x1xf32>
    %4 = vector.extract_strided_slice %0 {offsets = [0, 2], sizes = [3, 1], strides = [1, 1]} : vector<3x4xf32> to vector<3x1xf32>
    %5 = vector.extract_strided_slice %0 {offsets = [0, 3], sizes = [3, 1], strides = [1, 1]} : vector<3x4xf32> to vector<3x1xf32>
    %c0_3 = arith.constant 0 : index
    %c0_4 = arith.constant 0 : index
    %c0_5 = arith.constant 0 : index
    %c0_6 = arith.constant 0 : index
    %6 = vector.load %arg2[%c0_3, %c0_4, %c0_5, %c0_6] : memref<1x4x4x16xf32, #tpu.memory_space<vmem>>, vector<1x1x4x16xf32>
    %7 = vector.shape_cast %6 : vector<1x1x4x16xf32> to vector<4x16xf32>
    %8 = vector.extract_strided_slice %7 {offsets = [0, 0], sizes = [1, 16], strides = [1, 1]} : vector<4x16xf32> to vector<1x16xf32>
    %9 = vector.broadcast %2 : vector<3x1xf32> to vector<3x16xf32>
    %10 = vector.broadcast %8 : vector<1x16xf32> to vector<3x16xf32>
    %11 = arith.mulf %9, %10 : vector<3x16xf32>
    %12 = vector.extract_strided_slice %7 {offsets = [1, 0], sizes = [1, 16], strides = [1, 1]} : vector<4x16xf32> to vector<1x16xf32>
    %13 = vector.broadcast %3 : vector<3x1xf32> to vector<3x16xf32>
    %14 = vector.broadcast %12 : vector<1x16xf32> to vector<3x16xf32>
    %15 = arith.mulf %13, %14 : vector<3x16xf32>
    %16 = arith.addf %11, %15 : vector<3x16xf32>
    %17 = vector.extract_strided_slice %7 {offsets = [2, 0], sizes = [1, 16], strides = [1, 1]} : vector<4x16xf32> to vector<1x16xf32>
    %18 = vector.broadcast %4 : vector<3x1xf32> to vector<3x16xf32>
    %19 = vector.broadcast %17 : vector<1x16xf32> to vector<3x16xf32>
    %20 = arith.mulf %18, %19 : vector<3x16xf32>
    %21 = arith.addf %16, %20 : vector<3x16xf32>
    %22 = vector.extract_strided_slice %7 {offsets = [3, 0], sizes = [1, 16], strides = [1, 1]} : vector<4x16xf32> to vector<1x16xf32>
    %23 = vector.broadcast %5 : vector<3x1xf32> to vector<3x16xf32>
    %24 = vector.broadcast %22 : vector<1x16xf32> to vector<3x16xf32>
    %25 = arith.mulf %23, %24 : vector<3x16xf32>
    %26 = arith.addf %21, %25 : vector<3x16xf32>
    %27 = vector.broadcast %1 : vector<3x1xf32> to vector<3x16xf32>
    %28 = arith.addf %26, %27 : vector<3x16xf32>
    %c0_7 = arith.constant 0 : index
    %c0_8 = arith.constant 0 : index
    %c0_9 = arith.constant 0 : index
    %c0_10 = arith.constant 0 : index
    %29 = vector.load %arg5[%c0_7, %c0_8, %c0_9, %c0_10] : memref<1x4x3x16xf32, #tpu.memory_space<vmem>>, vector<1x1x3x16xf32>
    %30 = vector.shape_cast %29 : vector<1x1x3x16xf32> to vector<3x16xf32>
    %31 = vector.shape_cast %28 : vector<3x16xf32> to vector<1x1x3x16xf32>
    tpu.vector_store %arg5[%c0_7, %c0_8, %c0_9, %c0_10], %31 {strides = array<i32>} : memref<1x4x3x16xf32, #tpu.memory_space<vmem>>, vector<1x1x3x16xf32>,
    %c0_11 = arith.constant 0 : index
    %c1 = arith.constant 1 : index
    %c0_12 = arith.constant 0 : index
    %c0_13 = arith.constant 0 : index
    %32 = vector.load %arg2[%c0_11, %c1, %c0_12, %c0_13] : memref<1x4x4x16xf32, #tpu.memory_space<vmem>>, vector<1x1x4x16xf32>
    %33 = vector.shape_cast %32 : vector<1x1x4x16xf32> to vector<4x16xf32>
    %34 = vector.extract_strided_slice %33 {offsets = [0, 0], sizes = [1, 16], strides = [1, 1]} : vector<4x16xf32> to vector<1x16xf32>
    %35 = vector.broadcast %2 : vector<3x1xf32> to vector<3x16xf32>
    %36 = vector.broadcast %34 : vector<1x16xf32> to vector<3x16xf32>
    %37 = arith.mulf %35, %36 : vector<3x16xf32>
    %38 = vector.extract_strided_slice %33 {offsets = [1, 0], sizes = [1, 16], strides = [1, 1]} : vector<4x16xf32> to vector<1x16xf32>
    %39 = vector.broadcast %3 : vector<3x1xf32> to vector<3x16xf32>
    %40 = vector.broadcast %38 : vector<1x16xf32> to vector<3x16xf32>
    %41 = arith.mulf %39, %40 : vector<3x16xf32>
    %42 = arith.addf %37, %41 : vector<3x16xf32>
    %43 = vector.extract_strided_slice %33 {offsets = [2, 0], sizes = [1, 16], strides = [1, 1]} : vector<4x16xf32> to vector<1x16xf32>
    %44 = vector.broadcast %4 : vector<3x1xf32> to vector<3x16xf32>
    %45 = vector.broadcast %43 : vector<1x16xf32> to vector<3x16xf32>
    %46 = arith.mulf %44, %45 : vector<3x16xf32>
    %47 = arith.addf %42, %46 : vector<3x16xf32>
    %48 = vector.extract_strided_slice %33 {offsets = [3, 0], sizes = [1, 16], strides = [1, 1]} : vector<4x16xf32> to vector<1x16xf32>
    %49 = vector.broadcast %5 : vector<3x1xf32> to vector<3x16xf32>
    %50 = vector.broadcast %48 : vector<1x16xf32> to vector<3x16xf32>
    %51 = arith.mulf %49, %50 : vector<3x16xf32>
    %52 = arith.addf %47, %51 : vector<3x16xf32>
    %53 = vector.broadcast %1 : vector<3x1xf32> to vector<3x16xf32>
    %54 = arith.addf %52, %53 : vector<3x16xf32>
    %c0_14 = arith.constant 0 : index
    %c1_15 = arith.constant 1 : index
    %c0_16 = arith.constant 0 : index
    %c0_17 = arith.constant 0 : index
    %55 = vector.load %arg5[%c0_14, %c1_15, %c0_16, %c0_17] : memref<1x4x3x16xf32, #tpu.memory_space<vmem>>, vector<1x1x3x16xf32>
    %56 = vector.shape_cast %55 : vector<1x1x3x16xf32> to vector<3x16xf32>
    %57 = vector.shape_cast %54 : vector<3x16xf32> to vector<1x1x3x16xf32>
    tpu.vector_store %arg5[%c0_14, %c1_15, %c0_16, %c0_17], %57 {strides = array<i32>} : memref<1x4x3x16xf32, #tpu.memory_space<vmem>>, vector<1x1x3x16xf32>,
    %c0_18 = arith.constant 0 : index
    %c2 = arith.constant 2 : index
    %c0_19 = arith.constant 0 : index
    %c0_20 = arith.constant 0 : index
    %58 = vector.load %arg2[%c0_18, %c2, %c0_19, %c0_20] : memref<1x4x4x16xf32, #tpu.memory_space<vmem>>, vector<1x1x4x16xf32>
    %59 = vector.shape_cast %58 : vector<1x1x4x16xf32> to vector<4x16xf32>
    %60 = vector.extract_strided_slice %59 {offsets = [0, 0], sizes = [1, 16], strides = [1, 1]} : vector<4x16xf32> to vector<1x16xf32>
    %61 = vector.broadcast %2 : vector<3x1xf32> to vector<3x16xf32>
    %62 = vector.broadcast %60 : vector<1x16xf32> to vector<3x16xf32>
    %63 = arith.mulf %61, %62 : vector<3x16xf32>
    %64 = vector.extract_strided_slice %59 {offsets = [1, 0], sizes = [1, 16], strides = [1, 1]} : vector<4x16xf32> to vector<1x16xf32>
    %65 = vector.broadcast %3 : vector<3x1xf32> to vector<3x16xf32>
    %66 = vector.broadcast %64 : vector<1x16xf32> to vector<3x16xf32>
    %67 = arith.mulf %65, %66 : vector<3x16xf32>
    %68 = arith.addf %63, %67 : vector<3x16xf32>
    %69 = vector.extract_strided_slice %59 {offsets = [2, 0], sizes = [1, 16], strides = [1, 1]} : vector<4x16xf32> to vector<1x16xf32>
    %70 = vector.broadcast %4 : vector<3x1xf32> to vector<3x16xf32>
    %71 = vector.broadcast %69 : vector<1x16xf32> to vector<3x16xf32>
    %72 = arith.mulf %70, %71 : vector<3x16xf32>
    %73 = arith.addf %68, %72 : vector<3x16xf32>
    %74 = vector.extract_strided_slice %59 {offsets = [3, 0], sizes = [1, 16], strides = [1, 1]} : vector<4x16xf32> to vector<1x16xf32>
    %75 = vector.broadcast %5 : vector<3x1xf32> to vector<3x16xf32>
    %76 = vector.broadcast %74 : vector<1x16xf32> to vector<3x16xf32>
    %77 = arith.mulf %75, %76 : vector<3x16xf32>
    %78 = arith.addf %73, %77 : vector<3x16xf32>
    %79 = vector.broadcast %1 : vector<3x1xf32> to vector<3x16xf32>
    %80 = arith.addf %78, %79 : vector<3x16xf32>
    %c0_21 = arith.constant 0 : index
    %c2_22 = arith.constant 2 : index
    %c0_23 = arith.constant 0 : index
    %c0_24 = arith.constant 0 : index
    %81 = vector.load %arg5[%c0_21, %c2_22, %c0_23, %c0_24] : memref<1x4x3x16xf32, #tpu.memory_space<vmem>>, vector<1x1x3x16xf32>
    %82 = vector.shape_cast %81 : vector<1x1x3x16xf32> to vector<3x16xf32>
    %83 = vector.shape_cast %80 : vector<3x16xf32> to vector<1x1x3x16xf32>
    tpu.vector_store %arg5[%c0_21, %c2_22, %c0_23, %c0_24], %83 {strides = array<i32>} : memref<1x4x3x16xf32, #tpu.memory_space<vmem>>, vector<1x1x3x16xf32>,
    %c0_25 = arith.constant 0 : index
    %c3 = arith.constant 3 : index
    %c0_26 = arith.constant 0 : index
    %c0_27 = arith.constant 0 : index
    %84 = vector.load %arg2[%c0_25, %c3, %c0_26, %c0_27] : memref<1x4x4x16xf32, #tpu.memory_space<vmem>>, vector<1x1x4x16xf32>
    %85 = vector.shape_cast %84 : vector<1x1x4x16xf32> to vector<4x16xf32>
    %86 = vector.extract_strided_slice %85 {offsets = [0, 0], sizes = [1, 16], strides = [1, 1]} : vector<4x16xf32> to vector<1x16xf32>
    %87 = vector.broadcast %2 : vector<3x1xf32> to vector<3x16xf32>
    %88 = vector.broadcast %86 : vector<1x16xf32> to vector<3x16xf32>
    %89 = arith.mulf %87, %88 : vector<3x16xf32>
    %90 = vector.extract_strided_slice %85 {offsets = [1, 0], sizes = [1, 16], strides = [1, 1]} : vector<4x16xf32> to vector<1x16xf32>
    %91 = vector.broadcast %3 : vector<3x1xf32> to vector<3x16xf32>
    %92 = vector.broadcast %90 : vector<1x16xf32> to vector<3x16xf32>
    %93 = arith.mulf %91, %92 : vector<3x16xf32>
    %94 = arith.addf %89, %93 : vector<3x16xf32>
    %95 = vector.extract_strided_slice %85 {offsets = [2, 0], sizes = [1, 16], strides = [1, 1]} : vector<4x16xf32> to vector<1x16xf32>
    %96 = vector.broadcast %4 : vector<3x1xf32> to vector<3x16xf32>
    %97 = vector.broadcast %95 : vector<1x16xf32> to vector<3x16xf32>
    %98 = arith.mulf %96, %97 : vector<3x16xf32>
    %99 = arith.addf %94, %98 : vector<3x16xf32>
    %100 = vector.extract_strided_slice %85 {offsets = [3, 0], sizes = [1, 16], strides = [1, 1]} : vector<4x16xf32> to vector<1x16xf32>
    %101 = vector.broadcast %5 : vector<3x1xf32> to vector<3x16xf32>
    %102 = vector.broadcast %100 : vector<1x16xf32> to vector<3x16xf32>
    %103 = arith.mulf %101, %102 : vector<3x16xf32>
    %104 = arith.addf %99, %103 : vector<3x16xf32>
    %105 = vector.broadcast %1 : vector<3x1xf32> to vector<3x16xf32>
    %106 = arith.addf %104, %105 : vector<3x16xf32>
    %c0_28 = arith.constant 0 : index
    %c3_29 = arith.constant 3 : index
    %c0_30 = arith.constant 0 : index
    %c0_31 = arith.constant 0 : index
    %107 = vector.load %arg5[%c0_28, %c3_29, %c0_30, %c0_31] : memref<1x4x3x16xf32, #tpu.memory_space<vmem>>, vector<1x1x3x16xf32>
    %108 = vector.shape_cast %107 : vector<1x1x3x16xf32> to vector<3x16xf32>
    %109 = vector.shape_cast %106 : vector<3x16xf32> to vector<1x1x3x16xf32>
    tpu.vector_store %arg5[%c0_28, %c3_29, %c0_30, %c0_31], %109 {strides = array<i32>} : memref<1x4x3x16xf32, #tpu.memory_space<vmem>>, vector<1x1x3x16xf32>,
    return
  }
  func.func @transform_0(%arg0: i32, %arg1: i32) -> (i32, i32, i32, i32) {
    %c0_i32 = arith.constant 0 : i32
    %c0_i32_0 = arith.constant 0 : i32
    %c0_i32_1 = arith.constant 0 : i32
    return %arg0, %c0_i32, %c0_i32_0, %arg1 : i32, i32, i32, i32
  }
  func.func @transform_1(%arg0: i32, %arg1: i32) -> (i32, i32) {
    %c0_i32 = arith.constant 0 : i32
    %c0_i32_0 = arith.constant 0 : i32
    %c0_i32_1 = arith.constant 0 : i32
    return %c0_i32, %c0_i32_0 : i32, i32
  }
  func.func @transform_2(%arg0: i32, %arg1: i32) -> (i32, i32) {
    %c0_i32 = arith.constant 0 : i32
    %c0_i32_0 = arith.constant 0 : i32
    %c0_i32_1 = arith.constant 0 : i32
    return %c0_i32, %c0_i32_0 : i32, i32
  }
  func.func @transform_3(%arg0: i32, %arg1: i32) -> (i32, i32, i32, i32) {
    %c0_i32 = arith.constant 0 : i32
    %c0_i32_0 = arith.constant 0 : i32
    %c0_i32_1 = arith.constant 0 : i32
    return %arg0, %c0_i32, %c0_i32_0, %arg1 : i32, i32, i32, i32
  }
}

</mosaic_0001>

<llo_original>
// kernel: put_tail_forward.1
$region0: #{put_tail_forward.1}
  #allocation0 [shape = 'u32[]', space=smem, size = 0x4, offset = 0x4, fixed_abs, tag = 'smem constant byte address 0x4 - core index']
  #allocation1 [shape = 'u32[144,128]{1,0:T(1,128)}', space=vmem, size = 0x12000, scoped, tag = 'internal scratch']
  %s0 = inlined_call_operand.hbm [shape: f32[2,4,4,16], index: 0, kind: input, shape index: {}]
  %s1 = inlined_call_operand.vmem [shape: f32[3,4], index: 1, kind: input, shape index: {}]
  %s2 = inlined_call_operand.vmem [shape: f32[3,1], index: 2, kind: input, shape index: {}]
  %s3 = inlined_call_operand.vmem [shape: f32[2,4,3,16], index: 3, kind: output, shape index: {}]
  %s4 = sld [smem:[#allocation0]]
  $region49: #{put_tail_forward.1} parent=0
    _
  %s6 = ssub.s32 1, %s4
  %s7 = scalar_select 0, %s6, %s4
  $region1: #{put_tail_forward.1} parent=0
    #allocation2 [shape = 'u8[16384]{0}', space=vmem, size = 0x4000, scoped, tag = 'input window, operand 0']
    #allocation3 [shape = 's32[2]{0}', space=sflag, size = 0x8, scoped, tag = 'scoped memory for put_tail_forward.1']
    %8 = vsyncpa [#allocation3], 0
    %s9 = scalar_lea.sflag [#allocation3], 1
    %10 = vsyncpa %s9, 0
    loop: start=0, step=1, limit=4
    $region2: #{put_tail_forward.1} parent=1 // loop_pre_header
      _
    $region3: #{put_tail_forward.1} parent=1 // loop_header
      %s12 = sphi 0, %s16
      %p13 = scmp.ge.s32.totalorder %s12, 4
      %s19 = sphi 0, %s31
      %s20 = sphi 0, %s27
      %s21 = sphi 0, %s19
      %s22 = sphi 0, %s20
      %s23 = sphi 0, %s21
      %s24 = sphi 0, %s22
      %s36 = sphi 0, %s38
      %s39 = sphi 0, %s36
      %s40 = sphi 0, %s39
      %s56 = sphi 0, %s40
      %s60 = sphi 0, %s60
      %s62 = sphi 0, %s60
      %s63 = sphi 0, %s62
      %s77 = sphi 0, %s63
      %s81 = sphi 0, %s81
      %s83 = sphi 0, %s81
      %s84 = sphi 0, %s83
      %s98 = sphi 0, %s84
      %s106 = sphi 0, %s108
      %s109 = sphi 0, %s106
      %s110 = sphi 0, %s109
      %s126 = sphi 0, %s110
    $region4: #{put_tail_forward.1} parent=1 // loop_header_branch
      %15 = sbr.rel (%p13) target = $region8
    $region5: #{put_tail_forward.1} parent=1 // loop_body
      %s17 = ssub.s32 %s12, 1
      %s18 = ssub.s32 %s12, 2
      %s25 = sadd.s32 1, %s20
      %p26 = scmp.ge.s32.totalorder %s25, 1
      %s27 = scalar_select %p26, 0, %s25
      %s28 = sadd.s32 1, %s19
      %s29 = scalar_select %p26, %s28, %s19
      %p30 = scmp.ge.s32.totalorder %s29, 2
      %s31 = scalar_select %p30, 0, %s29
      %s32 = ssub.s32 %s19, %s31
      %s33 = ssub.s32 %s20, %s27
      %s34 = sor.u32 %s32, %s33
      %p35 = scmp.eq.s32.totalorder %s34, 0
      %s37 = sadd.s32 %s36, 1
      %s38 = scalar_select %p35, %s36, %s37
      %p41 = pneg %p35
      %p42 = scmp.eq.s32.totalorder %s12, 1
      %p43 = por %p41, %p42
      %p44 = scmp.ne.s32.totalorder %s36, %s39
      %p45 = scmp.eq.s32.totalorder %s12, 0
      %p46 = por %p44, %p45
      %p47 = scmp.ne.s32.totalorder %s36, %s39
      %p48 = scmp.eq.s32.totalorder %s17, 1
      %p49 = por %p47, %p48
      %p50 = scmp.ne.s32.totalorder %s39, %s40
      %p51 = scmp.eq.s32.totalorder %s17, 0
      %p52 = por %p50, %p51
      %p53 = scmp.ne.s32.totalorder %s39, %s40
      %p54 = scmp.eq.s32.totalorder %s18, 1
      %p55 = por %p53, %p54
      %p57 = scmp.ne.s32.totalorder %s40, %s56
      %p58 = scmp.eq.s32.totalorder %s18, 0
      %p59 = por %p57, %p58
      %s61 = sadd.s32 %s60, 1
      %p64 = scmp.eq.s32.totalorder %s12, 1
      %p65 = scmp.ne.s32.totalorder %s60, %s62
      %p66 = scmp.eq.s32.totalorder %s12, 0
      %p67 = por %p65, %p66
      %p68 = scmp.ne.s32.totalorder %s60, %s62
      %p69 = scmp.eq.s32.totalorder %s17, 1
      %p70 = por %p68, %p69
      %p71 = scmp.ne.s32.totalorder %s62, %s63
      %p72 = scmp.eq.s32.totalorder %s17, 0
      %p73 = por %p71, %p72
      %p74 = scmp.ne.s32.totalorder %s62, %s63
      %p75 = scmp.eq.s32.totalorder %s18, 1
      %p76 = por %p74, %p75
      %p78 = scmp.ne.s32.totalorder %s63, %s77
      %p79 = scmp.eq.s32.totalorder %s18, 0
      %p80 = por %p78, %p79
      %s82 = sadd.s32 %s81, 1
      %p85 = scmp.eq.s32.totalorder %s12, 1
      %p86 = scmp.ne.s32.totalorder %s81, %s83
      %p87 = scmp.eq.s32.totalorder %s12, 0
      %p88 = por %p86, %p87
      %p89 = scmp.ne.s32.totalorder %s81, %s83
      %p90 = scmp.eq.s32.totalorder %s17, 1
      %p91 = por %p89, %p90
      %p92 = scmp.ne.s32.totalorder %s83, %s84
      %p93 = scmp.eq.s32.totalorder %s17, 0
      %p94 = por %p92, %p93
      %p95 = scmp.ne.s32.totalorder %s83, %s84
      %p96 = scmp.eq.s32.totalorder %s18, 1
      %p97 = por %p95, %p96
      %p99 = scmp.ne.s32.totalorder %s84, %s98
      %p100 = scmp.eq.s32.totalorder %s18, 0
      %p101 = por %p99, %p100
      %s102 = ssub.s32 %s19, %s31
      %s103 = ssub.s32 %s20, %s27
      %s104 = sor.u32 %s102, %s103
      %p105 = scmp.eq.s32.totalorder %s104, 0
      %s107 = sadd.s32 %s106, 1
      %s108 = scalar_select %p105, %s106, %s107
      %p111 = pneg %p105
      %p112 = scmp.eq.s32.totalorder %s12, 1
      %p113 = por %p111, %p112
      %p114 = scmp.ne.s32.totalorder %s106, %s109
      %p115 = scmp.eq.s32.totalorder %s12, 0
      %p116 = por %p114, %p115
      %p117 = scmp.ne.s32.totalorder %s106, %s109
      %p118 = scmp.eq.s32.totalorder %s17, 1
      %p119 = por %p117, %p118
      %p120 = scmp.ne.s32.totalorder %s109, %s110
      %p121 = scmp.eq.s32.totalorder %s17, 0
      %p122 = por %p120, %p121
      %p123 = scmp.ne.s32.totalorder %s109, %s110
      %p124 = scmp.eq.s32.totalorder %s18, 1
      %p125 = por %p123, %p124
      %p127 = scmp.ne.s32.totalorder %s110, %s126
      %p128 = scmp.eq.s32.totalorder %s18, 0
      %p129 = por %p127, %p128
      %p130 = scmp.le.s32.totalorder 1, %s12
      %p131 = scmp.lt.s32.totalorder %s12, 3
      %p132 = pnand %p130, %p131
      %p133 = pneg %p132
      // Predicated region
      $region9: #{put_tail_forward.1} parent=5 // pred_check
        _
      $region10: #{put_tail_forward.1} parent=5 // pred_check_branch
        %135 = sbr.rel (%p132) target = $region12
      $region11: #{put_tail_forward.1} parent=5 // pred_region
        %s136 = ssub.s32 %s12, 1
        // Predicated region
        $region13: #{put_tail_forward.1} parent=11 // pred_check
          %p137 = pneg %p73
        $region14: #{put_tail_forward.1} parent=11 // pred_check_branch
          %139 = sbr.rel (%p137) target = $region16
        $region15: #{put_tail_forward.1} parent=11 // pred_region
          _
        $region16: #{put_tail_forward.1} parent=11 // pred_fallthru
          _
        // Predicated region
        $region17: #{put_tail_forward.1} parent=11 // pred_check
          %p140 = pneg %p94
        $region18: #{put_tail_forward.1} parent=11 // pred_check_branch
          %142 = sbr.rel (%p140) target = $region20
        $region19: #{put_tail_forward.1} parent=11 // pred_region
          _
        $region20: #{put_tail_forward.1} parent=11 // pred_fallthru
          _
      $region12: #{put_tail_forward.1} parent=5 // pred_fallthru
        _
      %p143 = scmp.lt.s32.totalorder %s12, 2
      // Predicated region
      $region21: #{put_tail_forward.1} parent=5 // pred_check
        %p144 = pneg %p143
      $region22: #{put_tail_forward.1} parent=5 // pred_check_branch
        %146 = sbr.rel (%p144) target = $region24
      $region23: #{put_tail_forward.1} parent=5 // pred_region
        // Predicated region
        $region25: #{put_tail_forward.1} parent=23 // pred_check
          %p147 = pneg %p46
        $region26: #{put_tail_forward.1} parent=23 // pred_check_branch
          %149 = sbr.rel (%p147) target = $region28
        $region27: #{put_tail_forward.1} parent=23 // pred_region
          %s150 = sand.u32 %s36, 1
          %s151 = scalar_lea.sflag [#allocation3], %s150
          %s152 = sand.u32 %s36, 1
          %s153 = smul.addr %s152, 16
          %s154 = scalar_lea.vmem [#allocation2], %s153
          %s156 = ssub.s32 256, 256
          %157 = vsyncadd %s151, %s156
          %s158 = smul.addr %s19, 4
          %s159 = sadd.s32 %s20, %s158
          %s160 = smul.addr %s159, 64
          %s161 = scalar_lea.hbm %s0, %s160
          %s162 = sshll.u32 %s154, 4
          %s163 = int_to_ptr.vmem [resolvable:$true] %s162
          %168 = dma.hbm_to_vmem [thread:$0]  %s161, 256, %s163, %s151, 64, 64, 4
        $region28: #{put_tail_forward.1} parent=23 // pred_fallthru
          _
      $region24: #{put_tail_forward.1} parent=5 // pred_fallthru
        _
      %p169 = scmp.le.s32.totalorder 1, %s12
      %p170 = scmp.lt.s32.totalorder %s12, 3
      %p171 = pnand %p169, %p170
      %p172 = pneg %p171
      // Predicated region
      $region29: #{put_tail_forward.1} parent=5 // pred_check
        _
      $region30: #{put_tail_forward.1} parent=5 // pred_check_branch
        %174 = sbr.rel (%p171) target = $region32
      $region31: #{put_tail_forward.1} parent=5 // pred_region
        %s175 = ssub.s32 %s12, 1
        %s176 = sand.u32 %s39, 1
        %s177 = scalar_lea.sflag [#allocation3], %s176
        %s178 = sand.u32 %s39, 1
        %s179 = smul.addr %s178, 16
        %s180 = scalar_lea.vmem [#allocation2], %s179
        // Predicated region
        $region33: #{put_tail_forward.1} parent=31 // pred_check
          %p181 = pneg %p52
        $region34: #{put_tail_forward.1} parent=31 // pred_check_branch
          %183 = sbr.rel (%p181) target = $region36
        $region35: #{put_tail_forward.1} parent=31 // pred_region
          %184 = dma.done %s177, 256
        $region36: #{put_tail_forward.1} parent=31 // pred_fallthru
          _
        %s185 = sand.u32 %s39, 1
        %s186 = scalar_lea.sflag [#allocation3], %s185
        %s187 = sand.u32 %s39, 1
        %s188 = smul.addr %s187, 16
        %s189 = scalar_lea.vmem [#allocation2], %s188
        %p190 = pneg %p52
        %p191 = pneg %p49
        %p192 = pneg %p73
        %p193 = pneg %p70
        %p194 = pneg %p94
        %p195 = pneg %p91
        %p196 = pneg %p122
        %p197 = pneg %p119
        %p198 = scmp.lt.s32.totalorder %s21, 1
        %s199 = scalar_select %p198, %s21, 1
        %p200 = scmp.lt.s32.totalorder %s22, 0
        %s201 = scalar_select %p200, %s22, 0
        %s202 = smul.addr %s199, 4
        %s203 = sadd.s32 %s201, %s202
        %s204 = smul.addr %s203, 4
        %s205 = scalar_lea.vmem %s3, %s204
        %p206 = scmp.lt.s32.totalorder %s21, 1
        %s207 = scalar_select %p206, %s21, 1
        %p208 = scmp.lt.s32.totalorder %s22, 0
        %s209 = scalar_select %p208, %s22, 0
        %s210 = smul.addr %s207, 4
        %s211 = sadd.s32 %s209, %s210
        %s212 = smul.addr %s211, 4
        %s213 = scalar_lea.vmem %s3, %s212
        %v214 = vld [vmem:[%s1] sm:$0x7]
        %v215 = vld [vmem:[%s2] sm:$0x7]
        %v216 = vld [vmem:[%s180] sm:$0xf]
        %218 = vset.pattern.permute.xlu0 0
        %219 = vperm.xlu0 %218, %v214
        %v220 = vpop.permute.xlu0 %219
        %v222 = vlaneseq
        %v223 = vshrl.u32 %v222, 7
        %v224 = vsub.s32 0, %v223
        %v225 = vrot.slane %v216, %v224
        %v226 = vmul.f32 %v220, %v225
        %227 = vset.pattern.permute.xlu0 1
        %228 = vperm.xlu0 %227, %v214
        %v229 = vpop.permute.xlu0 %228
        %v231 = vlaneseq
        %v232 = vshrl.u32 %v231, 7
        %v233 = vsub.s32 1, %v232
        %v234 = vrot.slane %v216, %v233
        %v235 = vmul.f32 %v229, %v234
        %v236 = vadd.f32 %v226, %v235
        %237 = vset.pattern.permute.xlu0 2
        %238 = vperm.xlu0 %237, %v214
        %v239 = vpop.permute.xlu0 %238
        %v241 = vlaneseq
        %v242 = vshrl.u32 %v241, 7
        %v243 = vsub.s32 2, %v242
        %v244 = vrot.slane %v216, %v243
        %v245 = vmul.f32 %v239, %v244
        %v246 = vadd.f32 %v236, %v245
        %247 = vset.pattern.permute.xlu0 3
        %248 = vperm.xlu0 %247, %v214
        %v249 = vpop.permute.xlu0 %248
        %v251 = vlaneseq
        %v252 = vshrl.u32 %v251, 7
        %v253 = vsub.s32 3, %v252
        %v254 = vrot.slane %v216, %v253
        %v255 = vmul.f32 %v249, %v254
        %v256 = vadd.f32 %v246, %v255
        %258 = vset.pattern.permute.xlu0 0
        %259 = vperm.xlu0 %258, %v215
        %v260 = vpop.permute.xlu0 %259
        %v262 = vadd.f32 %v256, %v260
        %vm263 = vcmask 124928
        %264 = vst.msk [vmem:[%s213] sm:$0x7] %vm263, %v262
        %s265 = scalar_lea.vmem %s180, 4 [#allocation2]
        %v266 = vld [vmem:[%s265] sm:$0xf]
        %v267 = vlaneseq
        %v268 = vshrl.u32 %v267, 7
        %v269 = vsub.s32 0, %v268
        %v270 = vrot.slane %v266, %v269
        %v271 = vmul.f32 %v220, %v270
        %v272 = vlaneseq
        %v273 = vshrl.u32 %v272, 7
        %v274 = vsub.s32 1, %v273
        %v275 = vrot.slane %v266, %v274
        %v276 = vmul.f32 %v229, %v275
        %v277 = vadd.f32 %v271, %v276
        %v278 = vlaneseq
        %v279 = vshrl.u32 %v278, 7
        %v280 = vsub.s32 2, %v279
        %v281 = vrot.slane %v266, %v280
        %v282 = vmul.f32 %v239, %v281
        %v283 = vadd.f32 %v277, %v282
        %v284 = vlaneseq
        %v285 = vshrl.u32 %v284, 7
        %v286 = vsub.s32 3, %v285
        %v287 = vrot.slane %v266, %v286
        %v288 = vmul.f32 %v249, %v287
        %v289 = vadd.f32 %v283, %v288
        %v290 = vadd.f32 %v289, %v260
        %s291 = scalar_lea.vmem %s213, 4
        %292 = vst.msk [vmem:[%s291] sm:$0x7] %vm263, %v290
        %s293 = scalar_lea.vmem %s180, 8 [#allocation2]
        %v294 = vld [vmem:[%s293] sm:$0xf]
        %v295 = vlaneseq
        %v296 = vshrl.u32 %v295, 7
        %v297 = vsub.s32 0, %v296
        %v298 = vrot.slane %v294, %v297
        %v299 = vmul.f32 %v220, %v298
        %v300 = vlaneseq
        %v301 = vshrl.u32 %v300, 7
        %v302 = vsub.s32 1, %v301
        %v303 = vrot.slane %v294, %v302
        %v304 = vmul.f32 %v229, %v303
        %v305 = vadd.f32 %v299, %v304
        %v306 = vlaneseq
        %v307 = vshrl.u32 %v306, 7
        %v308 = vsub.s32 2, %v307
        %v309 = vrot.slane %v294, %v308
        %v310 = vmul.f32 %v239, %v309
        %v311 = vadd.f32 %v305, %v310
        %v312 = vlaneseq
        %v313 = vshrl.u32 %v312, 7
        %v314 = vsub.s32 3, %v313
        %v315 = vrot.slane %v294, %v314
        %v316 = vmul.f32 %v249, %v315
        %v317 = vadd.f32 %v311, %v316
        %v318 = vadd.f32 %v317, %v260
        %s319 = scalar_lea.vmem %s213, 8
        %320 = vst.msk [vmem:[%s319] sm:$0x7] %vm263, %v318
        %s321 = scalar_lea.vmem %s180, 12 [#allocation2]
        %v322 = vld [vmem:[%s321] sm:$0xf]
        %v323 = vlaneseq
        %v324 = vshrl.u32 %v323, 7
        %v325 = vsub.s32 0, %v324
        %v326 = vrot.slane %v322, %v325
        %v327 = vmul.f32 %v220, %v326
        %v328 = vlaneseq
        %v329 = vshrl.u32 %v328, 7
        %v330 = vsub.s32 1, %v329
        %v331 = vrot.slane %v322, %v330
        %v332 = vmul.f32 %v229, %v331
        %v333 = vadd.f32 %v327, %v332
        %v334 = vlaneseq
        %v335 = vshrl.u32 %v334, 7
        %v336 = vsub.s32 2, %v335
        %v337 = vrot.slane %v322, %v336
        %v338 = vmul.f32 %v239, %v337
        %v339 = vadd.f32 %v333, %v338
        %v340 = vlaneseq
        %v341 = vshrl.u32 %v340, 7
        %v342 = vsub.s32 3, %v341
        %v343 = vrot.slane %v322, %v342
        %v344 = vmul.f32 %v249, %v343
        %v345 = vadd.f32 %v339, %v344
        %v346 = vadd.f32 %v345, %v260
        %s347 = scalar_lea.vmem %s213, 12
        %348 = vst.msk [vmem:[%s347] sm:$0x7] %vm263, %v346
        %p349 = scmp.lt.s32.totalorder %s21, 1
        %s350 = scalar_select %p349, %s21, 1
        %p351 = scmp.lt.s32.totalorder %s22, 0
        %s352 = scalar_select %p351, %s22, 0
        %s353 = smul.addr %s350, 4
        %s354 = sadd.s32 %s352, %s353
        %s355 = smul.addr %s354, 4
        %s356 = scalar_lea.vmem %s3, %s355
        // Predicated region
        $region37: #{put_tail_forward.1} parent=31 // pred_check
          %p357 = pneg %p119
        $region38: #{put_tail_forward.1} parent=31 // pred_check_branch
          %359 = sbr.rel (%p357) target = $region40
        $region39: #{put_tail_forward.1} parent=31 // pred_region
          _
        $region40: #{put_tail_forward.1} parent=31 // pred_fallthru
          _
      $region32: #{put_tail_forward.1} parent=5 // pred_fallthru
        _
      %p360 = scmp.le.s32.totalorder 2, %s12
      // Predicated region
      $region41: #{put_tail_forward.1} parent=5 // pred_check
        %p361 = pneg %p360
      $region42: #{put_tail_forward.1} parent=5 // pred_check_branch
        %363 = sbr.rel (%p361) target = $region44
      $region43: #{put_tail_forward.1} parent=5 // pred_region
        %s364 = ssub.s32 %s12, 2
        // Predicated region
        $region45: #{put_tail_forward.1} parent=43 // pred_check
          %p365 = pneg %p125
        $region46: #{put_tail_forward.1} parent=43 // pred_check_branch
          %367 = sbr.rel (%p365) target = $region48
        $region47: #{put_tail_forward.1} parent=43 // pred_region
          %p368 = scmp.lt.s32.totalorder %s23, 1
          %s369 = scalar_select %p368, %s23, 1
          %p370 = scmp.lt.s32.totalorder %s24, 0
          %s371 = scalar_select %p370, %s24, 0
          %s372 = smul.addr %s369, 4
          %s373 = sadd.s32 %s371, %s372
          %s374 = smul.addr %s373, 4
          %s375 = scalar_lea.vmem %s3, %s374
        $region48: #{put_tail_forward.1} parent=43 // pred_fallthru
          _
      $region44: #{put_tail_forward.1} parent=5 // pred_fallthru
        _
    $region6: #{put_tail_forward.1} parent=1 // loop_footer
      %s16 = sadd.s32 1, %s12
    $region7: #{put_tail_forward.1} parent=1 // loop_footer_branch
      %11 = sbr.rel target = $region3
    $region8: #{put_tail_forward.1} parent=1 // loop_exit
      _
    %376 = vsyncpa [#allocation3], 1
    %s377 = scalar_lea.sflag [#allocation3], 1
    %378 = vsyncpa %s377, 1

</llo_original>
